<compile_context>
chip_gen: v7x
topology: tpu7x:2x2x1
jax: 0.10.0
libtpu: 0.0.40
codegen_flags: <defaults>
</compile_context>

<pallas_src>
import jax
import jax.numpy as jnp
import numpy as np
from jax import lax
from jax.experimental import pallas as pl
from jax.experimental.pallas import tpu as pltpu

_NEG = -1.0e30  # finite "-inf" sentinel (keeps masked math NaN-free and tie-breaks exact)


def _round_up(x: int, m: int) -> int:
    return (x + m - 1) // m * m


def _one_kernel(reps_ref, w_ref, b_ref, starts_ref, ends_ref, labels_ref,
                out_ref, best_val_ref, best_row_ref):
    """One N-tile per grid step; per-bag running best carried in VMEM scratch.

    reps_ref   : (TILE_N, D)      bf16/f32   sentence representations (tiled over N)
    w_ref      : (D, C_pad)       bf16/f32   transposed dense weight (padded classes = 0)
    b_ref      : (1, C_pad)       f32        bias (padded classes = -1e30)
    starts_ref : (B, 1)           int32      bag start row
    ends_ref   : (B, 1)           int32      bag end row (exclusive)
    labels_ref : (B, 1)           int32      bag label
    out_ref    : (B, C_pad)       f32        selected prob row per bag (written on last tile)
    best_val_ref : (B, 1)  f32  scratch  running max of prob[:, label[b]] per bag
    best_row_ref : (B, C_pad) f32 scratch running selected prob row per bag
    """
    t = pl.program_id(0)
    tile_n = reps_ref.shape[0]
    c_pad = w_ref.shape[1]
    batch = out_ref.shape[0]
    f32 = jnp.float32

    @pl.when(t == 0)
    def _init():
        best_val_ref[...] = jnp.full(best_val_ref.shape, _NEG, f32)
        best_row_ref[...] = jnp.zeros(best_row_ref.shape, f32)

    # ---- softmax for this tile of sentences (bf16 operands on the MXU, f32 accumulate) ---
    logits = jnp.dot(reps_ref[...], w_ref[...],
                     preferred_element_type=f32) + b_ref[...]          # (TILE_N, C_pad)
    m = jnp.max(logits, axis=-1, keepdims=True)
    e = jnp.exp(logits - m)                                            # padded cols -> 0
    inv = 1.0 / jnp.sum(e, axis=-1, keepdims=True)                     # (TILE_N, 1)
    prob = e * inv                                                     # (TILE_N, C_pad)

    # ---- prob[:, label[b]] for all bags at once: one one-hot matmul on the MXU ----------
    labels = labels_ref[...]                                           # (B, 1) int32
    class_iota = lax.broadcasted_iota(jnp.int32, (batch, c_pad), 1)
    label_onehot = (class_iota == labels).astype(f32)                  # (B, C_pad)
    scores = lax.dot_general(label_onehot, prob, (((1,), (1,)), ((), ())),
                             precision=lax.Precision.HIGHEST,
                             preferred_element_type=f32)               # (B, TILE_N)

    # ---- vectorized in-bag mask + argmax (first index on ties) for all bags --------------
    lane = lax.broadcasted_iota(jnp.int32, (batch, tile_n), 1)         # local row ids
    row_global = t * tile_n + lane
    in_bag = jnp.logical_and(row_global >= starts_ref[...],
                             row_global < ends_ref[...])               # (B, TILE_N)
    masked = jnp.where(in_bag, scores, _NEG)
    tile_max = jnp.max(masked, axis=-1, keepdims=True)                 # (B, 1)
    cand = jnp.where(masked >= tile_max, lane, tile_n)
    sel = jnp.min(cand, axis=-1, keepdims=True)                        # first local argmax
    sel_onehot = (cand == sel).astype(f32)                             # (B, TILE_N), one-hot

    # ---- gather the selected (already normalized) prob rows for all bags: one matmul -----
    rows = jnp.dot(sel_onehot, prob,
                   precision=lax.Precision.HIGHEST,
                   preferred_element_type=f32)                         # (B, C_pad)

    # ---- merge with the running best (strict > keeps the earliest tile on exact ties) ----
    improved = tile_max > best_val_ref[...]                            # (B, 1) bool
    best_val_ref[...] = jnp.where(improved, tile_max, best_val_ref[...])
    best_row_ref[...] = jnp.where(improved, rows, best_row_ref[...])

    @pl.when(t == pl.num_programs(0) - 1)
    def _finalize():
        out_ref[...] = best_row_ref[...]


def one_forward(reps, w_t, b, scope, label, *, tile_n_max=512, use_bf16=True):
    """reps: (N, D); w_t: (D, C); b: (C,) or (1, C); scope: (B+1,) int; label: (B,) int."""
    n, d = reps.shape
    c = w_t.shape[1]
    batch = int(scope.shape[0]) - 1

    # Lane-dense class axis: pad to a multiple of 128.  Padded weight cols are 0 and the
    # padded bias is -1e30, so padded classes get exp(-inf) = 0 probability.
    c_pad = _round_up(c, 128)
    # Largest N tile that fits; re-derive tile_n_max per generation (v7x: 64 MiB physical
    # VMEM / 32 MiB scoped vs 128 MiB on v5e/v6e).
    tile_n = min(_round_up(tile_n_max, 8), _round_up(n, 8))
    n_pad = _round_up(n, tile_n)
    num_tiles = n_pad // tile_n

    reps_p = jnp.pad(jnp.asarray(reps, jnp.float32), ((0, n_pad - n), (0, 0)))
    w_p = jnp.pad(jnp.asarray(w_t, jnp.float32), ((0, 0), (0, c_pad - c)))
    b_p = jnp.pad(jnp.asarray(b, jnp.float32).reshape(1, c),
                  ((0, 0), (0, c_pad - c)), constant_values=_NEG)
    if use_bf16:
        # bf16 MXU operands; exp/softmax/selection stay f32 inside the kernel.
        reps_p = reps_p.astype(jnp.bfloat16)
        w_p = w_p.astype(jnp.bfloat16)

    scope = jnp.asarray(scope, jnp.int32)
    starts = scope[:-1].reshape(batch, 1)
    ends = scope[1:].reshape(batch, 1)
    labels = jnp.asarray(label, jnp.int32).reshape(batch, 1)

    grid_spec = pltpu.PrefetchScalarGridSpec(
        num_scalar_prefetch=0,
        grid=(num_tiles,),
        in_specs=[
            pl.BlockSpec((tile_n, d), lambda t: (t, 0)),     # reps: streamed over N
            pl.BlockSpec((d, c_pad), lambda t: (0, 0)),      # W^T: resident
            pl.BlockSpec((1, c_pad), lambda t: (0, 0)),      # bias: resident
            pl.BlockSpec((batch, 1), lambda t: (0, 0)),      # bag starts
            pl.BlockSpec((batch, 1), lambda t: (0, 0)),      # bag ends
            pl.BlockSpec((batch, 1), lambda t: (0, 0)),      # bag labels
        ],
        out_specs=pl.BlockSpec((batch, c_pad), lambda t: (0, 0)),
        scratch_shapes=[
            pltpu.VMEM((batch, 1), jnp.float32),        # running best score per bag
            pltpu.VMEM((batch, c_pad), jnp.float32),    # running best prob row per bag
        ],
    )

    out = pl.pallas_call(
        _one_kernel,
        out_shape=jax.ShapeDtypeStruct((batch, c_pad), jnp.float32),
        grid_spec=grid_spec,
        compiler_params=pltpu.CompilerParams(
            # The N axis carries per-bag running state -> must stay "arbitrary".
            dimension_semantics=("arbitrary",)),
    )(reps_p, w_p, b_p, starts, ends, labels)
    return out[:, :c]


def one_reference(reps, w_t, b, scope_np, label_np):
    """Pure-JAX reference for the training branch of the PyTorch module."""
    reps = jnp.asarray(reps, jnp.float32)
    w_t = jnp.asarray(w_t, jnp.float32)
    logits = reps @ w_t + jnp.asarray(b, jnp.float32).reshape(1, -1)
    prob = jax.nn.softmax(logits, axis=-1)
    rows = []
    for i in range(len(scope_np) - 1):
        p = prob[int(scope_np[i]):int(scope_np[i + 1])]
        idx = int(jnp.argmax(p[:, int(label_np[i])]))
        rows.append(p[idx])
    return jnp.stack(rows)


if __name__ == "__main__":
    # config: encoder='cnn' -> piece=1, filter_num=32, dropout=0.0, class_num=8
    filter_num, piece, class_num = 32, 1, 8
    D = filter_num * piece

    key = jax.random.PRNGKey(0)
    k_reps, k_w, k_b, k_reps2, k_lab2 = jax.random.split(key, 5)

    # nn.Linear(D, class_num): weight (C, D), bias (C,).  Pass transposed weight.
    bound = 1.0 / np.sqrt(D)
    w = jax.random.uniform(k_w, (class_num, D), jnp.float32, -bound, bound)
    b = jax.random.uniform(k_b, (class_num,), jnp.float32, -bound, bound)
    w_t = jnp.transpose(w)                           # (D, C)

    # ---- case 1: toy sizes (single tile), f32 operands, strict check --------------------
    N1 = 8
    scope1 = np.array([0, 3, 8], dtype=np.int32)     # 2 bags: rows [0,3) and [3,8)
    label1 = np.array([2, 5], dtype=np.int32)
    reps1 = jax.random.normal(k_reps, (N1, D), dtype=jnp.float32)

    out1 = jax.block_until_ready(
        one_forward(reps1, w_t, b, jnp.asarray(scope1), jnp.asarray(label1),
                    use_bf16=False))
    ref1 = one_reference(reps1, w_t, b, scope1, label1)
    np.testing.assert_allclose(np.asarray(out1), np.asarray(ref1), rtol=1e-5, atol=1e-5)

    # ---- case 2: same data, bf16 MXU operands (production fast path), looser check ------
    out2 = jax.block_until_ready(
        one_forward(reps1, w_t, b, jnp.asarray(scope1), jnp.asarray(label1),
                    use_bf16=True))
    reps1_bf = reps1.astype(jnp.bfloat16).astype(jnp.float32)
    w_t_bf = w_t.astype(jnp.bfloat16).astype(jnp.float32)
    ref2 = one_reference(reps1_bf, w_t_bf, b, scope1, label1)
    np.testing.assert_allclose(np.asarray(out2), np.asarray(ref2), rtol=2e-3, atol=2e-3)

    # ---- case 3: multi-tile path (bags straddling tile boundaries), f32, strict ---------
    N2 = 40
    scope2 = np.array([0, 7, 20, 25, 38, 40], dtype=np.int32)   # 5 bags
    label2 = np.asarray(jax.random.randint(k_lab2, (5,), 0, class_num), dtype=np.int32)
    reps2 = jax.random.normal(k_reps2, (N2, D), dtype=jnp.float32)

    out3 = jax.block_until_ready(
        one_forward(reps2, w_t, b, jnp.asarray(scope2), jnp.asarray(label2),
                    tile_n_max=16, use_bf16=False))             # forces 3 N-tiles
    ref3 = one_reference(reps2, w_t, b, scope2, label2)
    np.testing.assert_allclose(np.asarray(out3), np.asarray(ref3), rtol=1e-5, atol=1e-5)

    print("KERNEL_OK")
</pallas_src>

<mosaic_0001>
module attributes {stable_mosaic.version = 11 : i64} {
  func.func @_one_kernel(%arg0: i32, %arg1: memref<8x32xf32, #tpu.memory_space<vmem>>, %arg2: memref<32x128xf32, #tpu.memory_space<vmem>>, %arg3: memref<1x128xf32, #tpu.memory_space<vmem>>, %arg4: memref<2x1xi32, #tpu.memory_space<vmem>>, %arg5: memref<2x1xi32, #tpu.memory_space<vmem>>, %arg6: memref<2x1xi32, #tpu.memory_space<vmem>>, %arg7: memref<2x128xf32, #tpu.memory_space<vmem>>, %arg8: memref<2x1xf32, #tpu.memory_space<vmem>>, %arg9: memref<2x128xf32, #tpu.memory_space<vmem>>) attributes {dimension_semantics = [#tpu.dimension_semantics<arbitrary>], iteration_bounds = array<i64: 1>, scalar_prefetch = 0 : i64, scratch_operands = 2 : i64, tpu.core_type = #tpu.core_type<tc>, window_params = [{transform_indices = @transform_0, window_bounds = array<i64: 8, 32>}, {pipeline_mode = #tpu.pipeline_mode<synchronous>, transform_indices = @transform_1, window_bounds = array<i64: 32, 128>}, {pipeline_mode = #tpu.pipeline_mode<synchronous>, transform_indices = @transform_2, window_bounds = array<i64: 1, 128>}, {pipeline_mode = #tpu.pipeline_mode<synchronous>, transform_indices = @transform_3, window_bounds = array<i64: 2, 1>}, {pipeline_mode = #tpu.pipeline_mode<synchronous>, transform_indices = @transform_4, window_bounds = array<i64: 2, 1>}, {pipeline_mode = #tpu.pipeline_mode<synchronous>, transform_indices = @transform_5, window_bounds = array<i64: 2, 1>}, {pipeline_mode = #tpu.pipeline_mode<synchronous>, transform_indices = @transform_6, window_bounds = array<i64: 2, 128>}]} {
    %c0_i32 = arith.constant 0 : i32
    %0 = arith.cmpi eq, %arg0, %c0_i32 : i32
    %1 = arith.extui %0 : i1 to i32
    %c0_i32_0 = arith.constant 0 : i32
    %2 = arith.cmpi ne, %1, %c0_i32_0 : i32
    scf.if %2 {
      %cst_33 = arith.constant -1.000000e+30 : f32
      %66 = vector.broadcast %cst_33 : f32 to vector<2x1xf32>
      %c0_34 = arith.constant 0 : index
      %c0_35 = arith.constant 0 : index
      %67 = vector.load %arg8[%c0_34, %c0_35] : memref<2x1xf32, #tpu.memory_space<vmem>>, vector<2x1xf32>
      tpu.vector_store %arg8[%c0_34, %c0_35], %66 {strides = array<i32>} : memref<2x1xf32, #tpu.memory_space<vmem>>, vector<2x1xf32>,
      %cst_36 = arith.constant 0.000000e+00 : f32
      %68 = vector.broadcast %cst_36 : f32 to vector<2x128xf32>
      %c0_37 = arith.constant 0 : index
      %c0_38 = arith.constant 0 : index
      %69 = vector.load %arg9[%c0_37, %c0_38] : memref<2x128xf32, #tpu.memory_space<vmem>>, vector<2x128xf32>
      tpu.vector_store %arg9[%c0_37, %c0_38], %68 {strides = array<i32>} : memref<2x128xf32, #tpu.memory_space<vmem>>, vector<2x128xf32>,
    } else {
    }
    %c0 = arith.constant 0 : index
    %c0_1 = arith.constant 0 : index
    %3 = vector.load %arg1[%c0, %c0_1] : memref<8x32xf32, #tpu.memory_space<vmem>>, vector<8x32xf32>
    %c0_2 = arith.constant 0 : index
    %c0_3 = arith.constant 0 : index
    %4 = vector.load %arg2[%c0_2, %c0_3] : memref<32x128xf32, #tpu.memory_space<vmem>>, vector<32x128xf32>
    %cst = arith.constant dense<0.000000e+00> : vector<8x128xf32>
    %5 = tpu.matmul %3, %4, %cst {dimension_numbers = #tpu.dot_dimension_numbers<[1], [0], [0], [1], [0, 0, 1, 1], [], []>} : vector<8x32xf32>, vector<32x128xf32>, vector<8x128xf32> -> vector<8x128xf32>
    %c0_4 = arith.constant 0 : index
    %c0_5 = arith.constant 0 : index
    %6 = vector.load %arg3[%c0_4, %c0_5] : memref<1x128xf32, #tpu.memory_space<vmem>>, vector<1x128xf32>
    %7 = vector.broadcast %6 : vector<1x128xf32> to vector<8x128xf32>
    %8 = arith.addf %5, %7 : vector<8x128xf32>
    %cst_6 = arith.constant dense<0xFF800000> : vector<8xf32>
    %9 = vector.multi_reduction <maximumf>, %8, %cst_6 [1] : vector<8x128xf32> to vector<8xf32>
    %10 = vector.shape_cast %9 : vector<8xf32> to vector<8x1xf32>
    %11 = vector.broadcast %10 : vector<8x1xf32> to vector<8x128xf32>
    %12 = arith.subf %8, %11 : vector<8x128xf32>
    %13 = math.exp %12 : vector<8x128xf32>
    %cst_7 = arith.constant dense<0.000000e+00> : vector<8xf32>
    %14 = vector.multi_reduction <add>, %13, %cst_7 [1] : vector<8x128xf32> to vector<8xf32>
    %15 = vector.shape_cast %14 : vector<8xf32> to vector<8x1xf32>
    %cst_8 = arith.constant 1.000000e+00 : f32
    %16 = vector.broadcast %cst_8 : f32 to vector<8x1xf32>
    %17 = arith.divf %16, %15 : vector<8x1xf32>
    %18 = vector.broadcast %17 : vector<8x1xf32> to vector<8x128xf32>
    %19 = arith.mulf %13, %18 : vector<8x128xf32>
    %c0_9 = arith.constant 0 : index
    %c0_10 = arith.constant 0 : index
    %20 = vector.load %arg6[%c0_9, %c0_10] : memref<2x1xi32, #tpu.memory_space<vmem>>, vector<2x1xi32>
    %21 = tpu.iota {dimensions = array<i32: 1>} : vector<2x128xi32>
    %22 = vector.broadcast %20 : vector<2x1xi32> to vector<2x128xi32>
    %23 = arith.cmpi eq, %21, %22 : vector<2x128xi32>
    %24 = arith.extui %23 : vector<2x128xi1> to vector<2x128xi32>
    %25 = arith.sitofp %24 : vector<2x128xi32> to vector<2x128xf32>
    %cst_11 = arith.constant dense<0.000000e+00> : vector<2x8xf32>
    %26 = tpu.matmul %25, %19, %cst_11 {dimension_numbers = #tpu.dot_dimension_numbers<[1], [1], [0], [0], [0, 0, 1, 0], [], []>, precision = #tpu.contract_precision<fp32>} : vector<2x128xf32>, vector<8x128xf32>, vector<2x8xf32> -> vector<2x8xf32>
    %27 = tpu.iota {dimensions = array<i32: 1>} : vector<2x8xi32>
    %c8_i32 = arith.constant 8 : i32
    %28 = arith.muli %arg0, %c8_i32 : i32
    %29 = vector.broadcast %28 : i32 to vector<2x8xi32>
    %30 = arith.addi %29, %27 : vector<2x8xi32>
    %c0_12 = arith.constant 0 : index
    %c0_13 = arith.constant 0 : index
    %31 = vector.load %arg4[%c0_12, %c0_13] : memref<2x1xi32, #tpu.memory_space<vmem>>, vector<2x1xi32>
    %32 = vector.broadcast %31 : vector<2x1xi32> to vector<2x8xi32>
    %33 = arith.cmpi sge, %30, %32 : vector<2x8xi32>
    %c0_14 = arith.constant 0 : index
    %c0_15 = arith.constant 0 : index
    %34 = vector.load %arg5[%c0_14, %c0_15] : memref<2x1xi32, #tpu.memory_space<vmem>>, vector<2x1xi32>
    %35 = vector.broadcast %34 : vector<2x1xi32> to vector<2x8xi32>
    %36 = arith.cmpi slt, %30, %35 : vector<2x8xi32>
    %37 = arith.andi %33, %36 : vector<2x8xi1>
    %cst_16 = arith.constant -1.000000e+30 : f32
    %38 = vector.broadcast %cst_16 : f32 to vector<2x8xf32>
    %39 = arith.select %37, %26, %38 : vector<2x8xi1>, vector<2x8xf32>
    %cst_17 = arith.constant dense<0xFF800000> : vector<2xf32>
    %40 = vector.multi_reduction <maximumf>, %39, %cst_17 [1] : vector<2x8xf32> to vector<2xf32>
    %41 = vector.shape_cast %40 : vector<2xf32> to vector<2x1xf32>
    %42 = vector.broadcast %41 : vector<2x1xf32> to vector<2x8xf32>
    %43 = arith.cmpf oge, %39, %42 : vector<2x8xf32>
    %c8_i32_18 = arith.constant 8 : i32
    %44 = vector.broadcast %c8_i32_18 : i32 to vector<2x8xi32>
    %45 = arith.select %43, %27, %44 : vector<2x8xi1>, vector<2x8xi32>
    %cst_19 = arith.constant dense<2147483647> : vector<2xi32>
    %46 = vector.multi_reduction <minsi>, %45, %cst_19 [1] : vector<2x8xi32> to vector<2xi32>
    %47 = vector.shape_cast %46 : vector<2xi32> to vector<2x1xi32>
    %48 = vector.broadcast %47 : vector<2x1xi32> to vector<2x8xi32>
    %49 = arith.cmpi eq, %45, %48 : vector<2x8xi32>
    %50 = arith.extui %49 : vector<2x8xi1> to vector<2x8xi32>
    %51 = arith.sitofp %50 : vector<2x8xi32> to vector<2x8xf32>
    %cst_20 = arith.constant dense<0.000000e+00> : vector<2x128xf32>
    %52 = tpu.matmul %51, %19, %cst_20 {dimension_numbers = #tpu.dot_dimension_numbers<[1], [0], [0], [1], [0, 0, 1, 1], [], []>, precision = #tpu.contract_precision<fp32>} : vector<2x8xf32>, vector<8x128xf32>, vector<2x128xf32> -> vector<2x128xf32>
    %c0_21 = arith.constant 0 : index
    %c0_22 = arith.constant 0 : index
    %53 = vector.load %arg8[%c0_21, %c0_22] : memref<2x1xf32, #tpu.memory_space<vmem>>, vector<2x1xf32>
    %54 = arith.cmpf ogt, %41, %53 : vector<2x1xf32>
    %c0_23 = arith.constant 0 : index
    %c0_24 = arith.constant 0 : index
    %55 = vector.load %arg8[%c0_23, %c0_24] : memref<2x1xf32, #tpu.memory_space<vmem>>, vector<2x1xf32>
    %56 = arith.select %54, %41, %55 : vector<2x1xi1>, vector<2x1xf32>
    %c0_25 = arith.constant 0 : index
    %c0_26 = arith.constant 0 : index
    %57 = vector.load %arg8[%c0_25, %c0_26] : memref<2x1xf32, #tpu.memory_space<vmem>>, vector<2x1xf32>
    tpu.vector_store %arg8[%c0_25, %c0_26], %56 {strides = array<i32>} : memref<2x1xf32, #tpu.memory_space<vmem>>, vector<2x1xf32>,
    %c0_27 = arith.constant 0 : index
    %c0_28 = arith.constant 0 : index
    %58 = vector.load %arg9[%c0_27, %c0_28] : memref<2x128xf32, #tpu.memory_space<vmem>>, vector<2x128xf32>
    %59 = vector.shape_cast %54 : vector<2x1xi1> to vector<2x1xi1>
    %60 = vector.broadcast %59 : vector<2x1xi1> to vector<2x128xi1>
    %61 = arith.select %60, %52, %58 : vector<2x128xi1>, vector<2x128xf32>
    %c0_29 = arith.constant 0 : index
    %c0_30 = arith.constant 0 : index
    %62 = vector.load %arg9[%c0_29, %c0_30] : memref<2x128xf32, #tpu.memory_space<vmem>>, vector<2x128xf32>
    tpu.vector_store %arg9[%c0_29, %c0_30], %61 {strides = array<i32>} : memref<2x128xf32, #tpu.memory_space<vmem>>, vector<2x128xf32>,
    %c0_i32_31 = arith.constant 0 : i32
    %63 = arith.cmpi eq, %arg0, %c0_i32_31 : i32
    %64 = arith.extui %63 : i1 to i32
    %c0_i32_32 = arith.constant 0 : i32
    %65 = arith.cmpi ne, %64, %c0_i32_32 : i32
    scf.if %65 {
      %c0_33 = arith.constant 0 : index
      %c0_34 = arith.constant 0 : index
      %66 = vector.load %arg9[%c0_33, %c0_34] : memref<2x128xf32, #tpu.memory_space<vmem>>, vector<2x128xf32>
      %c0_35 = arith.constant 0 : index
      %c0_36 = arith.constant 0 : index
      %67 = vector.load %arg7[%c0_35, %c0_36] : memref<2x128xf32, #tpu.memory_space<vmem>>, vector<2x128xf32>
      tpu.vector_store %arg7[%c0_35, %c0_36], %66 {strides = array<i32>} : memref<2x128xf32, #tpu.memory_space<vmem>>, vector<2x128xf32>,
    } else {
    }
    return
  }
  func.func @transform_0(%arg0: i32) -> (i32, i32) {
    %c0_i32 = arith.constant 0 : i32
    %c0_i32_0 = arith.constant 0 : i32
    return %arg0, %c0_i32 : i32, i32
  }
  func.func @transform_1(%arg0: i32) -> (i32, i32) {
    %c0_i32 = arith.constant 0 : i32
    %c0_i32_0 = arith.constant 0 : i32
    %c0_i32_1 = arith.constant 0 : i32
    return %c0_i32, %c0_i32_0 : i32, i32
  }
  func.func @transform_2(%arg0: i32) -> (i32, i32) {
    %c0_i32 = arith.constant 0 : i32
    %c0_i32_0 = arith.constant 0 : i32
    %c0_i32_1 = arith.constant 0 : i32
    return %c0_i32, %c0_i32_0 : i32, i32
  }
  func.func @transform_3(%arg0: i32) -> (i32, i32) {
    %c0_i32 = arith.constant 0 : i32
    %c0_i32_0 = arith.constant 0 : i32
    %c0_i32_1 = arith.constant 0 : i32
    return %c0_i32, %c0_i32_0 : i32, i32
  }
  func.func @transform_4(%arg0: i32) -> (i32, i32) {
    %c0_i32 = arith.constant 0 : i32
    %c0_i32_0 = arith.constant 0 : i32
    %c0_i32_1 = arith.constant 0 : i32
    return %c0_i32, %c0_i32_0 : i32, i32
  }
  func.func @transform_5(%arg0: i32) -> (i32, i32) {
    %c0_i32 = arith.constant 0 : i32
    %c0_i32_0 = arith.constant 0 : i32
    %c0_i32_1 = arith.constant 0 : i32
    return %c0_i32, %c0_i32_0 : i32, i32
  }
  func.func @transform_6(%arg0: i32) -> (i32, i32) {
    %c0_i32 = arith.constant 0 : i32
    %c0_i32_0 = arith.constant 0 : i32
    %c0_i32_1 = arith.constant 0 : i32
    return %c0_i32, %c0_i32_0 : i32, i32
  }
}

</mosaic_0001>

<llo_original>
// kernel: tpu_custom_call.1
$region0: #{tpu_custom_call.1}
  #allocation0 [shape = 'u32[]', space=smem, size = 0x4, offset = 0x4, fixed_abs, tag = 'smem constant byte address 0x4 - core index']
  #allocation1 [shape = 'u32[144,128]{1,0:T(1,128)}', space=vmem, size = 0x12000, scoped, tag = 'internal scratch']
  #allocation2 [shape = 'f32[2,1]{1,0:T(2,128)}', space=vmem, size = 0x400, scoped, tag = 'scratch operand']
  #allocation3 [shape = 'f32[2,128]{1,0:T(2,128)}', space=vmem, size = 0x400, scoped, tag = 'scratch operand']
  %s0 = inlined_call_operand.vmem [shape: f32[8,32], index: 0, kind: input, shape index: {}]
  %s1 = inlined_call_operand.hbm [shape: f32[32,128], index: 1, kind: input, shape index: {}]
  %s2 = inlined_call_operand.vmem [shape: f32[1,128], index: 2, kind: input, shape index: {}]
  %s3 = inlined_call_operand.vmem [shape: s32[2,1], index: 3, kind: input, shape index: {}]
  %s4 = inlined_call_operand.vmem [shape: s32[2,1], index: 4, kind: input, shape index: {}]
  %s5 = inlined_call_operand.vmem [shape: s32[2,1], index: 5, kind: input, shape index: {}]
  %s6 = inlined_call_operand.hbm [shape: f32[2,128], index: 6, kind: output, shape index: {}]
  %s7 = sld [smem:[#allocation0]]
  $region46: #{tpu_custom_call.1} parent=0
    _
  %s9 = ssub.s32 1, %s7
  %s10 = scalar_select 0, %s9, %s7
  $region1: #{tpu_custom_call.1} parent=0
    #allocation4 [shape = 'u8[16384]{0}', space=vmem, size = 0x4000, scoped, tag = 'input window, operand 1, single buffered']
    #allocation5 [shape = 's32[1]{0}', space=sflag, size = 0x4, scoped, tag = 'scoped memory for tpu_custom_call.1']
    #allocation6 [shape = 's32[1]{0}', space=sflag, size = 0x4, scoped, tag = 'scoped memory for tpu_custom_call.1']
    #allocation7 [shape = 'u8[1024]{0}', space=vmem, size = 0x400, scoped, tag = 'output window, operand 0, single buffered']
    %11 = vsyncpa [#allocation5], 0
    %12 = vsyncpa [#allocation6], 0
    // Predicated region
    $region2: #{tpu_custom_call.1} parent=1 // pred_check
      _
    $region3: #{tpu_custom_call.1} parent=1 // pred_check_branch
      %14 = sbr.rel (0) target = $region5
    $region4: #{tpu_custom_call.1} parent=1 // pred_region
      _
    $region5: #{tpu_custom_call.1} parent=1 // pred_fallthru
      _
    // Predicated region
    $region6: #{tpu_custom_call.1} parent=1 // pred_check
      _
    $region7: #{tpu_custom_call.1} parent=1 // pred_check_branch
      %16 = sbr.rel (0) target = $region9
    $region8: #{tpu_custom_call.1} parent=1 // pred_region
      %s18 = ssub.s32 512, 512
      %19 = vsyncadd [#allocation5], %s18
      %s20 = sshll.u32 [#allocation4], 4
      %s21 = int_to_ptr.vmem [resolvable:$true] %s20
      %26 = dma.hbm_to_vmem [thread:$0]  %s1, 512, %s21, [#allocation5], 128, 128, 8
    $region9: #{tpu_custom_call.1} parent=1 // pred_fallthru
      _
    // Predicated region
    $region10: #{tpu_custom_call.1} parent=1 // pred_check
      _
    $region11: #{tpu_custom_call.1} parent=1 // pred_check_branch
      %28 = sbr.rel (0) target = $region13
    $region12: #{tpu_custom_call.1} parent=1 // pred_region
      _
    $region13: #{tpu_custom_call.1} parent=1 // pred_fallthru
      _
    // Predicated region
    $region14: #{tpu_custom_call.1} parent=1 // pred_check
      _
    $region15: #{tpu_custom_call.1} parent=1 // pred_check_branch
      %30 = sbr.rel (0) target = $region17
    $region16: #{tpu_custom_call.1} parent=1 // pred_region
      _
    $region17: #{tpu_custom_call.1} parent=1 // pred_fallthru
      _
    // Predicated region
    $region18: #{tpu_custom_call.1} parent=1 // pred_check
      _
    $region19: #{tpu_custom_call.1} parent=1 // pred_check_branch
      %32 = sbr.rel (0) target = $region21
    $region20: #{tpu_custom_call.1} parent=1 // pred_region
      _
    $region21: #{tpu_custom_call.1} parent=1 // pred_fallthru
      _
    // Predicated region
    $region22: #{tpu_custom_call.1} parent=1 // pred_check
      _
    $region23: #{tpu_custom_call.1} parent=1 // pred_check_branch
      %34 = sbr.rel (0) target = $region25
    $region24: #{tpu_custom_call.1} parent=1 // pred_region
      _
    $region25: #{tpu_custom_call.1} parent=1 // pred_fallthru
      _
    // Predicated region
    $region26: #{tpu_custom_call.1} parent=1 // pred_check
      _
    $region27: #{tpu_custom_call.1} parent=1 // pred_check_branch
      %36 = sbr.rel (0) target = $region29
    $region28: #{tpu_custom_call.1} parent=1 // pred_region
      %37 = dma.done [#allocation5], 512
    $region29: #{tpu_custom_call.1} parent=1 // pred_fallthru
      _
    %p38 = scmp.eq.s32.totalorder 0, 0
    // Predicated region
    $region30: #{tpu_custom_call.1} parent=1 // pred_check
      %p39 = pneg %p38
    $region31: #{tpu_custom_call.1} parent=1 // pred_check_branch
      %41 = sbr.rel (%p39) target = $region33
    $region32: #{tpu_custom_call.1} parent=1 // pred_region
      %vm42 = vcmask 1024
      %43 = vst.msk [vmem:[#allocation2] sm:$0x3] %vm42, -1e+30
      %44 = vst [vmem:[#allocation3] sm:$0x3] 0.0
    $region33: #{tpu_custom_call.1} parent=1 // pred_fallthru
      _
    %v45 = vld [vmem:[%s0] sm:$0xff]
    %v46 = vld [vmem:[#allocation4] sm:$0xff]
    %v47 = vld [vmem:[#allocation4 + $0x8] sm:$0xff]
    %v48 = vld [vmem:[#allocation4 + $0x10] sm:$0xff]
    %v49 = vld [vmem:[#allocation4 + $0x18] sm:$0xff]
    %v50 = vld [vmem:[%s2] sm:$0x1]
    %v52 = vlaneseq
    %v53 = vshrl.u32 %v52, 7
    %v54 = vsub.s32 0, %v53
    %v55 = vrot.slane %v50, %v54
    %vm57 = vcmask 261120
    %v59 = vsel %vm57, %v45, 0
    %61 = vmatprep.subr.mxu0 0.0
    %62 = vmatpush1.msra.mxu0 %v46
    %63 = vmatprep.subr.mxu0 0.0
    %64 = vmatpush1.msra.mxu0 %v47
    %65 = vmatprep.subr.mxu0 0.0
    %66 = vmatpush1.msra.mxu0 %v48
    %67 = vmatprep.subr.mxu0 0.0
    %68 = vmatpush1.msra.mxu0 %v49
    %69 = vmatprep.subr.mxu0 0.0
    %70 = vmatpush1.msra.mxu0 0.0
    %71 = vmatprep.subr.mxu0 0.0
    %72 = vmatpush1.msra.mxu0 0.0
    %73 = vmatprep.subr.mxu0 0.0
    %74 = vmatpush1.msra.mxu0 0.0
    %75 = vmatprep.subr.mxu0 0.0
    %76 = vmatpush1.msra.mxu0 0.0
    %77 = vmatprep.subr.mxu0 0.0
    %78 = vmatpush1.msra.mxu0 0.0
    %79 = vmatprep.subr.mxu0 0.0
    %80 = vmatpush1.msra.mxu0 0.0
    %81 = vmatprep.subr.mxu0 0.0
    %82 = vmatpush1.msra.mxu0 0.0
    %83 = vmatprep.subr.mxu0 0.0
    %84 = vmatpush1.msra.mxu0 0.0
    %85 = vmatprep.subr.mxu0 0.0
    %86 = vmatpush1.msra.mxu0 0.0
    %87 = vmatprep.subr.mxu0 0.0
    %88 = vmatpush1.msra.mxu0 0.0
    %89 = vmatprep.subr.mxu0 0.0
    %90 = vmatpush1.msra.mxu0 0.0
    %91 = vmatprep.subr.mxu0 0.0
    %92 = vmatpush1.msra.mxu0 0.0
    %93 = vmatprep.subr.mxu0 0.0
    %94 = vmatpush1.msra.mxu0 0.0
    %95 = vmatprep.subr.mxu0 0.0
    %96 = vmatpush1.msra.mxu0 0.0
    %97 = vmatprep.subr.mxu0 0.0
    %98 = vmatpush1.msra.mxu0 0.0
    %99 = vmatprep.subr.mxu0 0.0
    %100 = vmatpush1.msra.mxu0 0.0
    %101 = vmatprep.subr.mxu0 0.0
    %102 = vmatpush1.msra.mxu0 0.0
    %103 = vmatprep.subr.mxu0 0.0
    %104 = vmatpush1.msra.mxu0 0.0
    %105 = vmatprep.subr.mxu0 0.0
    %106 = vmatpush1.msra.mxu0 0.0
    %107 = vmatprep.subr.mxu0 0.0
    %108 = vmatpush1.msra.mxu0 0.0
    %109 = vmatprep.subr.mxu0 0.0
    %110 = vmatpush1.msra.mxu0 0.0
    %111 = vmatprep.subr.mxu0 0.0
    %112 = vmatpush1.msra.mxu0 0.0
    %113 = vmatprep.subr.mxu0 0.0
    %114 = vmatpush1.msra.mxu0 0.0
    %115 = vmatprep.subr.mxu0 0.0
    %116 = vmatpush1.msra.mxu0 0.0
    %117 = vmatprep.subr.mxu0 0.0
    %118 = vmatpush1.msra.mxu0 0.0
    %119 = vmatprep.subr.mxu0 0.0
    %120 = vmatpush1.msra.mxu0 0.0
    %121 = vmatprep.subr.mxu0 0.0
    %122 = vmatpush1.msra.mxu0 0.0
    %123 = vmatprep.subr.mxu0 0.0
    %124 = vmatpush1.msra.mxu0 0.0
    %125 = vmatprep.mubr.f32.mxu0 0.0
    %126 = vmatmul.mubr.f32.gmra.mrb[0].mxu0 %v59
    %v127 = vpop.f32.mrb[0].mxu0
    %v128 = vadd.f32 %v55, %v127
    %v129 = vpop.f32.mrb[0].mxu0
    %130 = vdwg.mxu0
    %131 = vmax.xlane.f32.xlu0 %v128
    %v132 = vpop.xlane.xlu0 %131
    %v133 = vsub.f32 %v128, %v132
    %v134 = vmul.f32 %v133, 1.442695
    %v135 = vpow.pop %v134
    %136 = vadd.xlane.f32.xlu0 %v135
    %v137 = vpop.xlane.xlu0 %136
    %v138 = vrcp.pop %v137
    %v139 = vmul.f32 1.0, %v138
    %v140 = vmul.f32 %v135, %v139
    %v141 = vld [vmem:[%s5] sm:$0x3]
    %v142 = vlaneseq
    %v143 = vand.u32 %v142, 127
    %144 = vset.pattern.permute.xlu0 0
    %145 = vperm.xlu0 %144, %v141
    %v146 = vpop.permute.xlu0 %145
    %vm147 = vcmp.eq.s32.totalorder %v143, %v146
    %v148 = vsel %vm147, 1, 0
    %v149 = vcvt.s32.f32 %v148
    %150 = vmatprep.subr.mxu0 0.0
    %v151 = vand.u32 %v140, 4294901760
    %152 = vmatpush1.xpose.msra.mxu0 %v151
    %153 = vmatprep.subr.mxu0 0.0
    %154 = vmatpush1.xpose.msra.mxu0 0.0
    %155 = vmatprep.subr.mxu0 0.0
    %156 = vmatpush1.xpose.msra.mxu0 0.0
    %157 = vmatprep.subr.mxu0 0.0
    %158 = vmatpush1.xpose.msra.mxu0 0.0
    %159 = vmatprep.subr.mxu0 0.0
    %160 = vmatpush1.xpose.msra.mxu0 0.0
    %161 = vmatprep.subr.mxu0 0.0
    %162 = vmatpush1.xpose.msra.mxu0 0.0
    %163 = vmatprep.subr.mxu0 0.0
    %164 = vmatpush1.xpose.msra.mxu0 0.0
    %165 = vmatprep.subr.mxu0 0.0
    %166 = vmatpush1.xpose.msra.mxu0 0.0
    %167 = vmatprep.subr.mxu0 0.0
    %168 = vmatpush1.xpose.msra.mxu0 0.0
    %169 = vmatprep.subr.mxu0 0.0
    %170 = vmatpush1.xpose.msra.mxu0 0.0
    %171 = vmatprep.subr.mxu0 0.0
    %172 = vmatpush1.xpose.msra.mxu0 0.0
    %173 = vmatprep.subr.mxu0 0.0
    %174 = vmatpush1.xpose.msra.mxu0 0.0
    %175 = vmatprep.subr.mxu0 0.0
    %176 = vmatpush1.xpose.msra.mxu0 0.0
    %177 = vmatprep.subr.mxu0 0.0
    %178 = vmatpush1.xpose.msra.mxu0 0.0
    %179 = vmatprep.subr.mxu0 0.0
    %180 = vmatpush1.xpose.msra.mxu0 0.0
    %181 = vmatprep.subr.mxu0 0.0
    %182 = vmatpush1.xpose.msra.mxu0 0.0
    %183 = vmatprep.subr.mxu0 0.0
    %184 = vmatpush1.xpose.msra.mxu0 0.0
    %185 = vmatprep.subr.mxu0 0.0
    %186 = vmatpush1.xpose.msra.mxu0 0.0
    %187 = vmatprep.subr.mxu0 0.0
    %188 = vmatpush1.xpose.msra.mxu0 0.0
    %189 = vmatprep.subr.mxu0 0.0
    %190 = vmatpush1.xpose.msra.mxu0 0.0
    %191 = vmatprep.subr.mxu0 0.0
    %192 = vmatpush1.xpose.msra.mxu0 0.0
    %193 = vmatprep.subr.mxu0 0.0
    %194 = vmatpush1.xpose.msra.mxu0 0.0
    %195 = vmatprep.subr.mxu0 0.0
    %196 = vmatpush1.xpose.msra.mxu0 0.0
    %197 = vmatprep.subr.mxu0 0.0
    %198 = vmatpush1.xpose.msra.mxu0 0.0
    %199 = vmatprep.subr.mxu0 0.0
    %200 = vmatpush1.xpose.msra.mxu0 0.0
    %201 = vmatprep.subr.mxu0 0.0
    %202 = vmatpush1.xpose.msra.mxu0 0.0
    %203 = vmatprep.subr.mxu0 0.0
    %204 = vmatpush1.xpose.msra.mxu0 0.0
    %205 = vmatprep.subr.mxu0 0.0
    %206 = vmatpush1.xpose.msra.mxu0 0.0
    %207 = vmatprep.subr.mxu0 0.0
    %208 = vmatpush1.xpose.msra.mxu0 0.0
    %209 = vmatprep.subr.mxu0 0.0
    %210 = vmatpush1.xpose.msra.mxu0 0.0
    %211 = vmatprep.subr.mxu0 0.0
    %212 = vmatpush1.xpose.msra.mxu0 0.0
    %213 = vmatprep.subr.mxu0 0.0
    %214 = vmatpush1.xpose.msra.mxu0 0.0
    %215 = vmatprep.mubr.f32.mxu0 0.0
    %v216 = vand.u32 %v149, 4294901760
    %v217 = vsub.f32 %v149, %v216
    %v218 = vand.u32 %v217, 4294901760
    %v219 = vsub.f32 %v217, %v218
    %v220 = vand.u32 %v219, 4294901760
    %221 = vmatmul.mubr.f32.gmra.mrb[0].mxu0 %v220
    %v222 = vpop.f32.mrb[0].mxu0
    %v223 = vadd.f32 0.0, %v222
    %v224 = vpop.f32.mrb[0].mxu0
    %225 = vdwg.mxu0
    %226 = vmatprep.subr.mxu0 0.0
    %v227 = vand.u32 %v140, 4294901760
    %v228 = vsub.f32 %v140, %v227
    %v229 = vand.u32 %v228, 4294901760
    %v230 = vsub.f32 %v228, %v229
    %v231 = vand.u32 %v230, 4294901760
    %232 = vmatpush1.xpose.msra.mxu0 %v231
    %233 = vmatprep.subr.mxu0 0.0
    %234 = vmatpush1.xpose.msra.mxu0 0.0
    %235 = vmatprep.subr.mxu0 0.0
    %236 = vmatpush1.xpose.msra.mxu0 0.0
    %237 = vmatprep.subr.mxu0 0.0
    %238 = vmatpush1.xpose.msra.mxu0 0.0
    %239 = vmatprep.subr.mxu0 0.0
    %240 = vmatpush1.xpose.msra.mxu0 0.0
    %241 = vmatprep.subr.mxu0 0.0
    %242 = vmatpush1.xpose.msra.mxu0 0.0
    %243 = vmatprep.subr.mxu0 0.0
    %244 = vmatpush1.xpose.msra.mxu0 0.0
    %245 = vmatprep.subr.mxu0 0.0
    %246 = vmatpush1.xpose.msra.mxu0 0.0
    %247 = vmatprep.subr.mxu0 0.0
    %248 = vmatpush1.xpose.msra.mxu0 0.0
    %249 = vmatprep.subr.mxu0 0.0
    %250 = vmatpush1.xpose.msra.mxu0 0.0
    %251 = vmatprep.subr.mxu0 0.0
    %252 = vmatpush1.xpose.msra.mxu0 0.0
    %253 = vmatprep.subr.mxu0 0.0
    %254 = vmatpush1.xpose.msra.mxu0 0.0
    %255 = vmatprep.subr.mxu0 0.0
    %256 = vmatpush1.xpose.msra.mxu0 0.0
    %257 = vmatprep.subr.mxu0 0.0
    %258 = vmatpush1.xpose.msra.mxu0 0.0
    %259 = vmatprep.subr.mxu0 0.0
    %260 = vmatpush1.xpose.msra.mxu0 0.0
    %261 = vmatprep.subr.mxu0 0.0
    %262 = vmatpush1.xpose.msra.mxu0 0.0
    %263 = vmatprep.subr.mxu0 0.0
    %264 = vmatpush1.xpose.msra.mxu0 0.0
    %265 = vmatprep.subr.mxu0 0.0
    %266 = vmatpush1.xpose.msra.mxu0 0.0
    %267 = vmatprep.subr.mxu0 0.0
    %268 = vmatpush1.xpose.msra.mxu0 0.0
    %269 = vmatprep.subr.mxu0 0.0
    %270 = vmatpush1.xpose.msra.mxu0 0.0
    %271 = vmatprep.subr.mxu0 0.0
    %272 = vmatpush1.xpose.msra.mxu0 0.0
    %273 = vmatprep.subr.mxu0 0.0
    %274 = vmatpush1.xpose.msra.mxu0 0.0
    %275 = vmatprep.subr.mxu0 0.0
    %276 = vmatpush1.xpose.msra.mxu0 0.0
    %277 = vmatprep.subr.mxu0 0.0
    %278 = vmatpush1.xpose.msra.mxu0 0.0
    %279 = vmatprep.subr.mxu0 0.0
    %280 = vmatpush1.xpose.msra.mxu0 0.0
    %281 = vmatprep.subr.mxu0 0.0
    %282 = vmatpush1.xpose.msra.mxu0 0.0
    %283 = vmatprep.subr.mxu0 0.0
    %284 = vmatpush1.xpose.msra.mxu0 0.0
    %285 = vmatprep.subr.mxu0 0.0
    %286 = vmatpush1.xpose.msra.mxu0 0.0
    %287 = vmatprep.subr.mxu0 0.0
    %288 = vmatpush1.xpose.msra.mxu0 0.0
    %289 = vmatprep.subr.mxu0 0.0
    %290 = vmatpush1.xpose.msra.mxu0 0.0
    %291 = vmatprep.subr.mxu0 0.0
    %292 = vmatpush1.xpose.msra.mxu0 0.0
    %293 = vmatprep.subr.mxu0 0.0
    %294 = vmatpush1.xpose.msra.mxu0 0.0
    %295 = vmatprep.mubr.f32.mxu0 0.0
    %v296 = vand.u32 %v149, 4294901760
    %297 = vmatmul.mubr.f32.gmra.mrb[0].mxu0 %v296
    %v298 = vpop.f32.mrb[0].mxu0
    %v299 = vadd.f32 %v223, %v298
    %v300 = vpop.f32.mrb[0].mxu0
    %301 = vdwg.mxu0
    %302 = vmatprep.subr.mxu0 0.0
    %v303 = vand.u32 %v140, 4294901760
    %v304 = vsub.f32 %v140, %v303
    %305 = vmatpush1.xpose.msra.mxu0 %v304
    %306 = vmatprep.subr.mxu0 0.0
    %307 = vmatpush1.xpose.msra.mxu0 0.0
    %308 = vmatprep.subr.mxu0 0.0
    %309 = vmatpush1.xpose.msra.mxu0 0.0
    %310 = vmatprep.subr.mxu0 0.0
    %311 = vmatpush1.xpose.msra.mxu0 0.0
    %312 = vmatprep.subr.mxu0 0.0
    %313 = vmatpush1.xpose.msra.mxu0 0.0
    %314 = vmatprep.subr.mxu0 0.0
    %315 = vmatpush1.xpose.msra.mxu0 0.0
    %316 = vmatprep.subr.mxu0 0.0
    %317 = vmatpush1.xpose.msra.mxu0 0.0
    %318 = vmatprep.subr.mxu0 0.0
    %319 = vmatpush1.xpose.msra.mxu0 0.0
    %320 = vmatprep.subr.mxu0 0.0
    %321 = vmatpush1.xpose.msra.mxu0 0.0
    %322 = vmatprep.subr.mxu0 0.0
    %323 = vmatpush1.xpose.msra.mxu0 0.0
    %324 = vmatprep.subr.mxu0 0.0
    %325 = vmatpush1.xpose.msra.mxu0 0.0
    %326 = vmatprep.subr.mxu0 0.0
    %327 = vmatpush1.xpose.msra.mxu0 0.0
    %328 = vmatprep.subr.mxu0 0.0
    %329 = vmatpush1.xpose.msra.mxu0 0.0
    %330 = vmatprep.subr.mxu0 0.0
    %331 = vmatpush1.xpose.msra.mxu0 0.0
    %332 = vmatprep.subr.mxu0 0.0
    %333 = vmatpush1.xpose.msra.mxu0 0.0
    %334 = vmatprep.subr.mxu0 0.0
    %335 = vmatpush1.xpose.msra.mxu0 0.0
    %336 = vmatprep.subr.mxu0 0.0
    %337 = vmatpush1.xpose.msra.mxu0 0.0
    %338 = vmatprep.subr.mxu0 0.0
    %339 = vmatpush1.xpose.msra.mxu0 0.0
    %340 = vmatprep.subr.mxu0 0.0
    %341 = vmatpush1.xpose.msra.mxu0 0.0
    %342 = vmatprep.subr.mxu0 0.0
    %343 = vmatpush1.xpose.msra.mxu0 0.0
    %344 = vmatprep.subr.mxu0 0.0
    %345 = vmatpush1.xpose.msra.mxu0 0.0
    %346 = vmatprep.subr.mxu0 0.0
    %347 = vmatpush1.xpose.msra.mxu0 0.0
    %348 = vmatprep.subr.mxu0 0.0
    %349 = vmatpush1.xpose.msra.mxu0 0.0
    %350 = vmatprep.subr.mxu0 0.0
    %351 = vmatpush1.xpose.msra.mxu0 0.0
    %352 = vmatprep.subr.mxu0 0.0
    %353 = vmatpush1.xpose.msra.mxu0 0.0
    %354 = vmatprep.subr.mxu0 0.0
    %355 = vmatpush1.xpose.msra.mxu0 0.0
    %356 = vmatprep.subr.mxu0 0.0
    %357 = vmatpush1.xpose.msra.mxu0 0.0
    %358 = vmatprep.subr.mxu0 0.0
    %359 = vmatpush1.xpose.msra.mxu0 0.0
    %360 = vmatprep.subr.mxu0 0.0
    %361 = vmatpush1.xpose.msra.mxu0 0.0
    %362 = vmatprep.subr.mxu0 0.0
    %363 = vmatpush1.xpose.msra.mxu0 0.0
    %364 = vmatprep.subr.mxu0 0.0
    %365 = vmatpush1.xpose.msra.mxu0 0.0
    %366 = vmatprep.subr.mxu0 0.0
    %367 = vmatpush1.xpose.msra.mxu0 0.0
    %368 = vmatprep.mubr.f32.mxu0 0.0
    %v369 = vand.u32 %v149, 4294901760
    %v370 = vsub.f32 %v149, %v369
    %371 = vmatmul.mubr.f32.gmra.mrb[0].mxu0 %v370
    %v372 = vpop.f32.mrb[0].mxu0
    %v373 = vadd.f32 %v299, %v372
    %v374 = vpop.f32.mrb[0].mxu0
    %375 = vdwg.mxu0
    %376 = vmatprep.subr.mxu0 0.0
    %v377 = vand.u32 %v140, 4294901760
    %378 = vmatpush1.xpose.msra.mxu0 %v377
    %379 = vmatprep.subr.mxu0 0.0
    %380 = vmatpush1.xpose.msra.mxu0 0.0
    %381 = vmatprep.subr.mxu0 0.0
    %382 = vmatpush1.xpose.msra.mxu0 0.0
    %383 = vmatprep.subr.mxu0 0.0
    %384 = vmatpush1.xpose.msra.mxu0 0.0
    %385 = vmatprep.subr.mxu0 0.0
    %386 = vmatpush1.xpose.msra.mxu0 0.0
    %387 = vmatprep.subr.mxu0 0.0
    %388 = vmatpush1.xpose.msra.mxu0 0.0
    %389 = vmatprep.subr.mxu0 0.0
    %390 = vmatpush1.xpose.msra.mxu0 0.0
    %391 = vmatprep.subr.mxu0 0.0
    %392 = vmatpush1.xpose.msra.mxu0 0.0
    %393 = vmatprep.subr.mxu0 0.0
    %394 = vmatpush1.xpose.msra.mxu0 0.0
    %395 = vmatprep.subr.mxu0 0.0
    %396 = vmatpush1.xpose.msra.mxu0 0.0
    %397 = vmatprep.subr.mxu0 0.0
    %398 = vmatpush1.xpose.msra.mxu0 0.0
    %399 = vmatprep.subr.mxu0 0.0
    %400 = vmatpush1.xpose.msra.mxu0 0.0
    %401 = vmatprep.subr.mxu0 0.0
    %402 = vmatpush1.xpose.msra.mxu0 0.0
    %403 = vmatprep.subr.mxu0 0.0
    %404 = vmatpush1.xpose.msra.mxu0 0.0
    %405 = vmatprep.subr.mxu0 0.0
    %406 = vmatpush1.xpose.msra.mxu0 0.0
    %407 = vmatprep.subr.mxu0 0.0
    %408 = vmatpush1.xpose.msra.mxu0 0.0
    %409 = vmatprep.subr.mxu0 0.0
    %410 = vmatpush1.xpose.msra.mxu0 0.0
    %411 = vmatprep.subr.mxu0 0.0
    %412 = vmatpush1.xpose.msra.mxu0 0.0
    %413 = vmatprep.subr.mxu0 0.0
    %414 = vmatpush1.xpose.msra.mxu0 0.0
    %415 = vmatprep.subr.mxu0 0.0
    %416 = vmatpush1.xpose.msra.mxu0 0.0
    %417 = vmatprep.subr.mxu0 0.0
    %418 = vmatpush1.xpose.msra.mxu0 0.0
    %419 = vmatprep.subr.mxu0 0.0
    %420 = vmatpush1.xpose.msra.mxu0 0.0
    %421 = vmatprep.subr.mxu0 0.0
    %422 = vmatpush1.xpose.msra.mxu0 0.0
    %423 = vmatprep.subr.mxu0 0.0
    %424 = vmatpush1.xpose.msra.mxu0 0.0
    %425 = vmatprep.subr.mxu0 0.0
    %426 = vmatpush1.xpose.msra.mxu0 0.0
    %427 = vmatprep.subr.mxu0 0.0
    %428 = vmatpush1.xpose.msra.mxu0 0.0
    %429 = vmatprep.subr.mxu0 0.0
    %430 = vmatpush1.xpose.msra.mxu0 0.0
    %431 = vmatprep.subr.mxu0 0.0
    %432 = vmatpush1.xpose.msra.mxu0 0.0
    %433 = vmatprep.subr.mxu0 0.0
    %434 = vmatpush1.xpose.msra.mxu0 0.0
    %435 = vmatprep.subr.mxu0 0.0
    %436 = vmatpush1.xpose.msra.mxu0 0.0
    %437 = vmatprep.subr.mxu0 0.0
    %438 = vmatpush1.xpose.msra.mxu0 0.0
    %439 = vmatprep.subr.mxu0 0.0
    %440 = vmatpush1.xpose.msra.mxu0 0.0
    %441 = vmatprep.mubr.f32.mxu0 0.0
    %v442 = vand.u32 %v149, 4294901760
    %v443 = vsub.f32 %v149, %v442
    %v444 = vand.u32 %v443, 4294901760
    %445 = vmatmul.mubr.f32.gmra.mrb[0].mxu0 %v444
    %v446 = vpop.f32.mrb[0].mxu0
    %v447 = vadd.f32 %v373, %v446
    %v448 = vpop.f32.mrb[0].mxu0
    %449 = vdwg.mxu0
    %450 = vmatprep.subr.mxu0 0.0
    %v451 = vand.u32 %v140, 4294901760
    %v452 = vsub.f32 %v140, %v451
    %v453 = vand.u32 %v452, 4294901760
    %454 = vmatpush1.xpose.msra.mxu0 %v453
    %455 = vmatprep.subr.mxu0 0.0
    %456 = vmatpush1.xpose.msra.mxu0 0.0
    %457 = vmatprep.subr.mxu0 0.0
    %458 = vmatpush1.xpose.msra.mxu0 0.0
    %459 = vmatprep.subr.mxu0 0.0
    %460 = vmatpush1.xpose.msra.mxu0 0.0
    %461 = vmatprep.subr.mxu0 0.0
    %462 = vmatpush1.xpose.msra.mxu0 0.0
    %463 = vmatprep.subr.mxu0 0.0
    %464 = vmatpush1.xpose.msra.mxu0 0.0
    %465 = vmatprep.subr.mxu0 0.0
    %466 = vmatpush1.xpose.msra.mxu0 0.0
    %467 = vmatprep.subr.mxu0 0.0
    %468 = vmatpush1.xpose.msra.mxu0 0.0
    %469 = vmatprep.subr.mxu0 0.0
    %470 = vmatpush1.xpose.msra.mxu0 0.0
    %471 = vmatprep.subr.mxu0 0.0
    %472 = vmatpush1.xpose.msra.mxu0 0.0
    %473 = vmatprep.subr.mxu0 0.0
    %474 = vmatpush1.xpose.msra.mxu0 0.0
    %475 = vmatprep.subr.mxu0 0.0
    %476 = vmatpush1.xpose.msra.mxu0 0.0
    %477 = vmatprep.subr.mxu0 0.0
    %478 = vmatpush1.xpose.msra.mxu0 0.0
    %479 = vmatprep.subr.mxu0 0.0
    %480 = vmatpush1.xpose.msra.mxu0 0.0
    %481 = vmatprep.subr.mxu0 0.0
    %482 = vmatpush1.xpose.msra.mxu0 0.0
    %483 = vmatprep.subr.mxu0 0.0
    %484 = vmatpush1.xpose.msra.mxu0 0.0
    %485 = vmatprep.subr.mxu0 0.0
    %486 = vmatpush1.xpose.msra.mxu0 0.0
    %487 = vmatprep.subr.mxu0 0.0
    %488 = vmatpush1.xpose.msra.mxu0 0.0
    %489 = vmatprep.subr.mxu0 0.0
    %490 = vmatpush1.xpose.msra.mxu0 0.0
    %491 = vmatprep.subr.mxu0 0.0
    %492 = vmatpush1.xpose.msra.mxu0 0.0
    %493 = vmatprep.subr.mxu0 0.0
    %494 = vmatpush1.xpose.msra.mxu0 0.0
    %495 = vmatprep.subr.mxu0 0.0
    %496 = vmatpush1.xpose.msra.mxu0 0.0
    %497 = vmatprep.subr.mxu0 0.0
    %498 = vmatpush1.xpose.msra.mxu0 0.0
    %499 = vmatprep.subr.mxu0 0.0
    %500 = vmatpush1.xpose.msra.mxu0 0.0
    %501 = vmatprep.subr.mxu0 0.0
    %502 = vmatpush1.xpose.msra.mxu0 0.0
    %503 = vmatprep.subr.mxu0 0.0
    %504 = vmatpush1.xpose.msra.mxu0 0.0
    %505 = vmatprep.subr.mxu0 0.0
    %506 = vmatpush1.xpose.msra.mxu0 0.0
    %507 = vmatprep.subr.mxu0 0.0
    %508 = vmatpush1.xpose.msra.mxu0 0.0
    %509 = vmatprep.subr.mxu0 0.0
    %510 = vmatpush1.xpose.msra.mxu0 0.0
    %511 = vmatprep.subr.mxu0 0.0
    %512 = vmatpush1.xpose.msra.mxu0 0.0
    %513 = vmatprep.subr.mxu0 0.0
    %514 = vmatpush1.xpose.msra.mxu0 0.0
    %515 = vmatprep.subr.mxu0 0.0
    %516 = vmatpush1.xpose.msra.mxu0 0.0
    %517 = vmatprep.mubr.f32.mxu0 0.0
    %v518 = vand.u32 %v149, 4294901760
    %519 = vmatmul.mubr.f32.gmra.mrb[0].mxu0 %v518
    %v520 = vpop.f32.mrb[0].mxu0
    %v521 = vadd.f32 %v447, %v520
    %v522 = vpop.f32.mrb[0].mxu0
    %523 = vdwg.mxu0
    %524 = vmatprep.subr.mxu0 0.0
    %v525 = vand.u32 %v140, 4294901760
    %526 = vmatpush1.xpose.msra.mxu0 %v525
    %527 = vmatprep.subr.mxu0 0.0
    %528 = vmatpush1.xpose.msra.mxu0 0.0
    %529 = vmatprep.subr.mxu0 0.0
    %530 = vmatpush1.xpose.msra.mxu0 0.0
    %531 = vmatprep.subr.mxu0 0.0
    %532 = vmatpush1.xpose.msra.mxu0 0.0
    %533 = vmatprep.subr.mxu0 0.0
    %534 = vmatpush1.xpose.msra.mxu0 0.0
    %535 = vmatprep.subr.mxu0 0.0
    %536 = vmatpush1.xpose.msra.mxu0 0.0
    %537 = vmatprep.subr.mxu0 0.0
    %538 = vmatpush1.xpose.msra.mxu0 0.0
    %539 = vmatprep.subr.mxu0 0.0
    %540 = vmatpush1.xpose.msra.mxu0 0.0
    %541 = vmatprep.subr.mxu0 0.0
    %542 = vmatpush1.xpose.msra.mxu0 0.0
    %543 = vmatprep.subr.mxu0 0.0
    %544 = vmatpush1.xpose.msra.mxu0 0.0
    %545 = vmatprep.subr.mxu0 0.0
    %546 = vmatpush1.xpose.msra.mxu0 0.0
    %547 = vmatprep.subr.mxu0 0.0
    %548 = vmatpush1.xpose.msra.mxu0 0.0
    %549 = vmatprep.subr.mxu0 0.0
    %550 = vmatpush1.xpose.msra.mxu0 0.0
    %551 = vmatprep.subr.mxu0 0.0
    %552 = vmatpush1.xpose.msra.mxu0 0.0
    %553 = vmatprep.subr.mxu0 0.0
    %554 = vmatpush1.xpose.msra.mxu0 0.0
    %555 = vmatprep.subr.mxu0 0.0
    %556 = vmatpush1.xpose.msra.mxu0 0.0
    %557 = vmatprep.subr.mxu0 0.0
    %558 = vmatpush1.xpose.msra.mxu0 0.0
    %559 = vmatprep.subr.mxu0 0.0
    %560 = vmatpush1.xpose.msra.mxu0 0.0
    %561 = vmatprep.subr.mxu0 0.0
    %562 = vmatpush1.xpose.msra.mxu0 0.0
    %563 = vmatprep.subr.mxu0 0.0
    %564 = vmatpush1.xpose.msra.mxu0 0.0
    %565 = vmatprep.subr.mxu0 0.0
    %566 = vmatpush1.xpose.msra.mxu0 0.0
    %567 = vmatprep.subr.mxu0 0.0
    %568 = vmatpush1.xpose.msra.mxu0 0.0
    %569 = vmatprep.subr.mxu0 0.0
    %570 = vmatpush1.xpose.msra.mxu0 0.0
    %571 = vmatprep.subr.mxu0 0.0
    %572 = vmatpush1.xpose.msra.mxu0 0.0
    %573 = vmatprep.subr.mxu0 0.0
    %574 = vmatpush1.xpose.msra.mxu0 0.0
    %575 = vmatprep.subr.mxu0 0.0
    %576 = vmatpush1.xpose.msra.mxu0 0.0
    %577 = vmatprep.subr.mxu0 0.0
    %578 = vmatpush1.xpose.msra.mxu0 0.0
    %579 = vmatprep.subr.mxu0 0.0
    %580 = vmatpush1.xpose.msra.mxu0 0.0
    %581 = vmatprep.subr.mxu0 0.0
    %582 = vmatpush1.xpose.msra.mxu0 0.0
    %583 = vmatprep.subr.mxu0 0.0
    %584 = vmatpush1.xpose.msra.mxu0 0.0
    %585 = vmatprep.subr.mxu0 0.0
    %586 = vmatpush1.xpose.msra.mxu0 0.0
    %587 = vmatprep.subr.mxu0 0.0
    %588 = vmatpush1.xpose.msra.mxu0 0.0
    %589 = vmatprep.mubr.f32.mxu0 0.0
    %v590 = vand.u32 %v149, 4294901760
    %591 = vmatmul.mubr.f32.gmra.mrb[0].mxu0 %v590
    %v592 = vpop.f32.mrb[0].mxu0
    %v593 = vadd.f32 %v521, %v592
    %v594 = vpop.f32.mrb[0].mxu0
    %595 = vdwg.mxu0
    %s596 = smul.u32 0, 8
    %v597 = vstv %s596
    %v598 = vadd.s32 %v597, %v143
    %v599 = vld [vmem:[%s3] sm:$0x3]
    %600 = vset.pattern.permute.xlu0 0
    %601 = vperm.xlu0 %600, %v599
    %v602 = vpop.permute.xlu0 %601
    %vm603 = vcmp.ge.s32.totalorder %v598, %v602
    %v604 = vld [vmem:[%s4] sm:$0x3]
    %605 = vset.pattern.permute.xlu0 0
    %606 = vperm.xlu0 %605, %v604
    %v607 = vpop.permute.xlu0 %606
    %vm608 = vcmp.lt.s32.totalorder %v598, %v607
    %vm609 = vmand %vm603, %vm608
    %v610 = vsel %vm609, %v593, -1e+30
    %vm611 = vcmask 58368
    %v612 = vsel %vm611, %v610, -inf
    %613 = vmax.xlane.f32.xlu0 %v612
    %v614 = vpop.xlane.xlu0 %613
    %vm615 = vcmp.ge.f32.partialorder %v610, %v614
    %v616 = vsel %vm615, %v143, 8
    %v617 = vsel %vm611, %v616, 2147483647
    %v618 = vand.u32 %v617, 65535
    %v619 = vshra.s32 %v617, 16
    %v620 = vcvt.s32.f32 %v618
    %v621 = vcvt.s32.f32 %v619
    %622 = vmin.xlane.f32.xlu0 %v621
    %v623 = vpop.xlane.xlu0 %622
    %vm624 = vcmp.eq.f32.partialorder %v621, %v623
    %v625 = vsel %vm624, %v620, inf
    %626 = vmin.xlane.f32.xlu0 %v625
    %v627 = vpop.xlane.xlu0 %626
    %v628 = vcvt.f32.s32 %v627
    %v629 = vcvt.f32.s32 %v623
    %v630 = vshll.u32 %v629, 16
    %v631 = vadd.s32 %v630, %v628
    %vm632 = vcmp.eq.s32.totalorder %v616, %v631
    %v633 = vsel %vm632, 1, 0
    %v634 = vcvt.s32.f32 %v633
    %vm635 = vcmask 64512
    %v637 = vsel %vm635, %v634, 0
    %639 = vmatprep.subr.mxu0 0.0
    %v640 = vand.u32 %v140, 4294901760
    %641 = vmatpush1.msra.mxu0 %v640
    %642 = vmatprep.subr.mxu0 0.0
    %643 = vmatpush1.msra.mxu0 0.0
    %644 = vmatprep.subr.mxu0 0.0
    %645 = vmatpush1.msra.mxu0 0.0
    %646 = vmatprep.subr.mxu0 0.0
    %647 = vmatpush1.msra.mxu0 0.0
    %648 = vmatprep.subr.mxu0 0.0
    %649 = vmatpush1.msra.mxu0 0.0
    %650 = vmatprep.subr.mxu0 0.0
    %651 = vmatpush1.msra.mxu0 0.0
    %652 = vmatprep.subr.mxu0 0.0
    %653 = vmatpush1.msra.mxu0 0.0
    %654 = vmatprep.subr.mxu0 0.0
    %655 = vmatpush1.msra.mxu0 0.0
    %656 = vmatprep.subr.mxu0 0.0
    %657 = vmatpush1.msra.mxu0 0.0
    %658 = vmatprep.subr.mxu0 0.0
    %659 = vmatpush1.msra.mxu0 0.0
    %660 = vmatprep.subr.mxu0 0.0
    %661 = vmatpush1.msra.mxu0 0.0
    %662 = vmatprep.subr.mxu0 0.0
    %663 = vmatpush1.msra.mxu0 0.0
    %664 = vmatprep.subr.mxu0 0.0
    %665 = vmatpush1.msra.mxu0 0.0
    %666 = vmatprep.subr.mxu0 0.0
    %667 = vmatpush1.msra.mxu0 0.0
    %668 = vmatprep.subr.mxu0 0.0
    %669 = vmatpush1.msra.mxu0 0.0
    %670 = vmatprep.subr.mxu0 0.0
    %671 = vmatpush1.msra.mxu0 0.0
    %672 = vmatprep.subr.mxu0 0.0
    %673 = vmatpush1.msra.mxu0 0.0
    %674 = vmatprep.subr.mxu0 0.0
    %675 = vmatpush1.msra.mxu0 0.0
    %676 = vmatprep.subr.mxu0 0.0
    %677 = vmatpush1.msra.mxu0 0.0
    %678 = vmatprep.subr.mxu0 0.0
    %679 = vmatpush1.msra.mxu0 0.0
    %680 = vmatprep.subr.mxu0 0.0
    %681 = vmatpush1.msra.mxu0 0.0
    %682 = vmatprep.subr.mxu0 0.0
    %683 = vmatpush1.msra.mxu0 0.0
    %684 = vmatprep.subr.mxu0 0.0
    %685 = vmatpush1.msra.mxu0 0.0
    %686 = vmatprep.subr.mxu0 0.0
    %687 = vmatpush1.msra.mxu0 0.0
    %688 = vmatprep.subr.mxu0 0.0
    %689 = vmatpush1.msra.mxu0 0.0
    %690 = vmatprep.subr.mxu0 0.0
    %691 = vmatpush1.msra.mxu0 0.0
    %692 = vmatprep.subr.mxu0 0.0
    %693 = vmatpush1.msra.mxu0 0.0
    %694 = vmatprep.subr.mxu0 0.0
    %695 = vmatpush1.msra.mxu0 0.0
    %696 = vmatprep.subr.mxu0 0.0
    %697 = vmatpush1.msra.mxu0 0.0
    %698 = vmatprep.subr.mxu0 0.0
    %699 = vmatpush1.msra.mxu0 0.0
    %700 = vmatprep.subr.mxu0 0.0
    %701 = vmatpush1.msra.mxu0 0.0
    %702 = vmatprep.subr.mxu0 0.0
    %703 = vmatpush1.msra.mxu0 0.0
    %704 = vmatprep.mubr.f32.mxu0 0.0
    %v705 = vand.u32 %v637, 4294901760
    %v706 = vsub.f32 %v637, %v705
    %v707 = vand.u32 %v706, 4294901760
    %v708 = vsub.f32 %v706, %v707
    %v709 = vand.u32 %v708, 4294901760
    %710 = vmatmul.mubr.f32.gmra.mrb[0].mxu0 %v709
    %v711 = vpop.f32.mrb[0].mxu0
    %v712 = vadd.f32 0.0, %v711
    %v713 = vpop.f32.mrb[0].mxu0
    %714 = vdwg.mxu0
    %715 = vmatprep.subr.mxu0 0.0
    %v716 = vand.u32 %v140, 4294901760
    %v717 = vsub.f32 %v140, %v716
    %v718 = vand.u32 %v717, 4294901760
    %v719 = vsub.f32 %v717, %v718
    %v720 = vand.u32 %v719, 4294901760
    %721 = vmatpush1.msra.mxu0 %v720
    %722 = vmatprep.subr.mxu0 0.0
    %723 = vmatpush1.msra.mxu0 0.0
    %724 = vmatprep.subr.mxu0 0.0
    %725 = vmatpush1.msra.mxu0 0.0
    %726 = vmatprep.subr.mxu0 0.0
    %727 = vmatpush1.msra.mxu0 0.0
    %728 = vmatprep.subr.mxu0 0.0
    %729 = vmatpush1.msra.mxu0 0.0
    %730 = vmatprep.subr.mxu0 0.0
    %731 = vmatpush1.msra.mxu0 0.0
    %732 = vmatprep.subr.mxu0 0.0
    %733 = vmatpush1.msra.mxu0 0.0
    %734 = vmatprep.subr.mxu0 0.0
    %735 = vmatpush1.msra.mxu0 0.0
    %736 = vmatprep.subr.mxu0 0.0
    %737 = vmatpush1.msra.mxu0 0.0
    %738 = vmatprep.subr.mxu0 0.0
    %739 = vmatpush1.msra.mxu0 0.0
    %740 = vmatprep.subr.mxu0 0.0
    %741 = vmatpush1.msra.mxu0 0.0
    %742 = vmatprep.subr.mxu0 0.0
    %743 = vmatpush1.msra.mxu0 0.0
    %744 = vmatprep.subr.mxu0 0.0
    %745 = vmatpush1.msra.mxu0 0.0
    %746 = vmatprep.subr.mxu0 0.0
    %747 = vmatpush1.msra.mxu0 0.0
    %748 = vmatprep.subr.mxu0 0.0
    %749 = vmatpush1.msra.mxu0 0.0
    %750 = vmatprep.subr.mxu0 0.0
    %751 = vmatpush1.msra.mxu0 0.0
    %752 = vmatprep.subr.mxu0 0.0
    %753 = vmatpush1.msra.mxu0 0.0
    %754 = vmatprep.subr.mxu0 0.0
    %755 = vmatpush1.msra.mxu0 0.0
    %756 = vmatprep.subr.mxu0 0.0
    %757 = vmatpush1.msra.mxu0 0.0
    %758 = vmatprep.subr.mxu0 0.0
    %759 = vmatpush1.msra.mxu0 0.0
    %760 = vmatprep.subr.mxu0 0.0
    %761 = vmatpush1.msra.mxu0 0.0
    %762 = vmatprep.subr.mxu0 0.0
    %763 = vmatpush1.msra.mxu0 0.0
    %764 = vmatprep.subr.mxu0 0.0
    %765 = vmatpush1.msra.mxu0 0.0
    %766 = vmatprep.subr.mxu0 0.0
    %767 = vmatpush1.msra.mxu0 0.0
    %768 = vmatprep.subr.mxu0 0.0
    %769 = vmatpush1.msra.mxu0 0.0
    %770 = vmatprep.subr.mxu0 0.0
    %771 = vmatpush1.msra.mxu0 0.0
    %772 = vmatprep.subr.mxu0 0.0
    %773 = vmatpush1.msra.mxu0 0.0
    %774 = vmatprep.subr.mxu0 0.0
    %775 = vmatpush1.msra.mxu0 0.0
    %776 = vmatprep.subr.mxu0 0.0
    %777 = vmatpush1.msra.mxu0 0.0
    %778 = vmatprep.subr.mxu0 0.0
    %779 = vmatpush1.msra.mxu0 0.0
    %780 = vmatprep.subr.mxu0 0.0
    %781 = vmatpush1.msra.mxu0 0.0
    %782 = vmatprep.subr.mxu0 0.0
    %783 = vmatpush1.msra.mxu0 0.0
    %784 = vmatprep.mubr.f32.mxu0 0.0
    %v785 = vand.u32 %v637, 4294901760
    %786 = vmatmul.mubr.f32.gmra.mrb[0].mxu0 %v785
    %v787 = vpop.f32.mrb[0].mxu0
    %v788 = vadd.f32 %v712, %v787
    %v789 = vpop.f32.mrb[0].mxu0
    %790 = vdwg.mxu0
    %791 = vmatprep.subr.mxu0 0.0
    %v792 = vand.u32 %v140, 4294901760
    %v793 = vsub.f32 %v140, %v792
    %794 = vmatpush1.msra.mxu0 %v793
    %795 = vmatprep.subr.mxu0 0.0
    %796 = vmatpush1.msra.mxu0 0.0
    %797 = vmatprep.subr.mxu0 0.0
    %798 = vmatpush1.msra.mxu0 0.0
    %799 = vmatprep.subr.mxu0 0.0
    %800 = vmatpush1.msra.mxu0 0.0
    %801 = vmatprep.subr.mxu0 0.0
    %802 = vmatpush1.msra.mxu0 0.0
    %803 = vmatprep.subr.mxu0 0.0
    %804 = vmatpush1.msra.mxu0 0.0
    %805 = vmatprep.subr.mxu0 0.0
    %806 = vmatpush1.msra.mxu0 0.0
    %807 = vmatprep.subr.mxu0 0.0
    %808 = vmatpush1.msra.mxu0 0.0
    %809 = vmatprep.subr.mxu0 0.0
    %810 = vmatpush1.msra.mxu0 0.0
    %811 = vmatprep.subr.mxu0 0.0
    %812 = vmatpush1.msra.mxu0 0.0
    %813 = vmatprep.subr.mxu0 0.0
    %814 = vmatpush1.msra.mxu0 0.0
    %815 = vmatprep.subr.mxu0 0.0
    %816 = vmatpush1.msra.mxu0 0.0
    %817 = vmatprep.subr.mxu0 0.0
    %818 = vmatpush1.msra.mxu0 0.0
    %819 = vmatprep.subr.mxu0 0.0
    %820 = vmatpush1.msra.mxu0 0.0
    %821 = vmatprep.subr.mxu0 0.0
    %822 = vmatpush1.msra.mxu0 0.0
    %823 = vmatprep.subr.mxu0 0.0
    %824 = vmatpush1.msra.mxu0 0.0
    %825 = vmatprep.subr.mxu0 0.0
    %826 = vmatpush1.msra.mxu0 0.0
    %827 = vmatprep.subr.mxu0 0.0
    %828 = vmatpush1.msra.mxu0 0.0
    %829 = vmatprep.subr.mxu0 0.0
    %830 = vmatpush1.msra.mxu0 0.0
    %831 = vmatprep.subr.mxu0 0.0
    %832 = vmatpush1.msra.mxu0 0.0
    %833 = vmatprep.subr.mxu0 0.0
    %834 = vmatpush1.msra.mxu0 0.0
    %835 = vmatprep.subr.mxu0 0.0
    %836 = vmatpush1.msra.mxu0 0.0
    %837 = vmatprep.subr.mxu0 0.0
    %838 = vmatpush1.msra.mxu0 0.0
    %839 = vmatprep.subr.mxu0 0.0
    %840 = vmatpush1.msra.mxu0 0.0
    %841 = vmatprep.subr.mxu0 0.0
    %842 = vmatpush1.msra.mxu0 0.0
    %843 = vmatprep.subr.mxu0 0.0
    %844 = vmatpush1.msra.mxu0 0.0
    %845 = vmatprep.subr.mxu0 0.0
    %846 = vmatpush1.msra.mxu0 0.0
    %847 = vmatprep.subr.mxu0 0.0
    %848 = vmatpush1.msra.mxu0 0.0
    %849 = vmatprep.subr.mxu0 0.0
    %850 = vmatpush1.msra.mxu0 0.0
    %851 = vmatprep.subr.mxu0 0.0
    %852 = vmatpush1.msra.mxu0 0.0
    %853 = vmatprep.subr.mxu0 0.0
    %854 = vmatpush1.msra.mxu0 0.0
    %855 = vmatprep.subr.mxu0 0.0
    %856 = vmatpush1.msra.mxu0 0.0
    %857 = vmatprep.mubr.f32.mxu0 0.0
    %v858 = vand.u32 %v637, 4294901760
    %v859 = vsub.f32 %v637, %v858
    %860 = vmatmul.mubr.f32.gmra.mrb[0].mxu0 %v859
    %v861 = vpop.f32.mrb[0].mxu0
    %v862 = vadd.f32 %v788, %v861
    %v863 = vpop.f32.mrb[0].mxu0
    %864 = vdwg.mxu0
    %865 = vmatprep.subr.mxu0 0.0
    %v866 = vand.u32 %v140, 4294901760
    %867 = vmatpush1.msra.mxu0 %v866
    %868 = vmatprep.subr.mxu0 0.0
    %869 = vmatpush1.msra.mxu0 0.0
    %870 = vmatprep.subr.mxu0 0.0
    %871 = vmatpush1.msra.mxu0 0.0
    %872 = vmatprep.subr.mxu0 0.0
    %873 = vmatpush1.msra.mxu0 0.0
    %874 = vmatprep.subr.mxu0 0.0
    %875 = vmatpush1.msra.mxu0 0.0
    %876 = vmatprep.subr.mxu0 0.0
    %877 = vmatpush1.msra.mxu0 0.0
    %878 = vmatprep.subr.mxu0 0.0
    %879 = vmatpush1.msra.mxu0 0.0
    %880 = vmatprep.subr.mxu0 0.0
    %881 = vmatpush1.msra.mxu0 0.0
    %882 = vmatprep.subr.mxu0 0.0
    %883 = vmatpush1.msra.mxu0 0.0
    %884 = vmatprep.subr.mxu0 0.0
    %885 = vmatpush1.msra.mxu0 0.0
    %886 = vmatprep.subr.mxu0 0.0
    %887 = vmatpush1.msra.mxu0 0.0
    %888 = vmatprep.subr.mxu0 0.0
    %889 = vmatpush1.msra.mxu0 0.0
    %890 = vmatprep.subr.mxu0 0.0
    %891 = vmatpush1.msra.mxu0 0.0
    %892 = vmatprep.subr.mxu0 0.0
    %893 = vmatpush1.msra.mxu0 0.0
    %894 = vmatprep.subr.mxu0 0.0
    %895 = vmatpush1.msra.mxu0 0.0
    %896 = vmatprep.subr.mxu0 0.0
    %897 = vmatpush1.msra.mxu0 0.0
    %898 = vmatprep.subr.mxu0 0.0
    %899 = vmatpush1.msra.mxu0 0.0
    %900 = vmatprep.subr.mxu0 0.0
    %901 = vmatpush1.msra.mxu0 0.0
    %902 = vmatprep.subr.mxu0 0.0
    %903 = vmatpush1.msra.mxu0 0.0
    %904 = vmatprep.subr.mxu0 0.0
    %905 = vmatpush1.msra.mxu0 0.0
    %906 = vmatprep.subr.mxu0 0.0
    %907 = vmatpush1.msra.mxu0 0.0
    %908 = vmatprep.subr.mxu0 0.0
    %909 = vmatpush1.msra.mxu0 0.0
    %910 = vmatprep.subr.mxu0 0.0
    %911 = vmatpush1.msra.mxu0 0.0
    %912 = vmatprep.subr.mxu0 0.0
    %913 = vmatpush1.msra.mxu0 0.0
    %914 = vmatprep.subr.mxu0 0.0
    %915 = vmatpush1.msra.mxu0 0.0
    %916 = vmatprep.subr.mxu0 0.0
    %917 = vmatpush1.msra.mxu0 0.0
    %918 = vmatprep.subr.mxu0 0.0
    %919 = vmatpush1.msra.mxu0 0.0
    %920 = vmatprep.subr.mxu0 0.0
    %921 = vmatpush1.msra.mxu0 0.0
    %922 = vmatprep.subr.mxu0 0.0
    %923 = vmatpush1.msra.mxu0 0.0
    %924 = vmatprep.subr.mxu0 0.0
    %925 = vmatpush1.msra.mxu0 0.0
    %926 = vmatprep.subr.mxu0 0.0
    %927 = vmatpush1.msra.mxu0 0.0
    %928 = vmatprep.subr.mxu0 0.0
    %929 = vmatpush1.msra.mxu0 0.0
    %930 = vmatprep.mubr.f32.mxu0 0.0
    %v931 = vand.u32 %v637, 4294901760
    %v932 = vsub.f32 %v637, %v931
    %v933 = vand.u32 %v932, 4294901760
    %934 = vmatmul.mubr.f32.gmra.mrb[0].mxu0 %v933
    %v935 = vpop.f32.mrb[0].mxu0
    %v936 = vadd.f32 %v862, %v935
    %v937 = vpop.f32.mrb[0].mxu0
    %938 = vdwg.mxu0
    %939 = vmatprep.subr.mxu0 0.0
    %v940 = vand.u32 %v140, 4294901760
    %v941 = vsub.f32 %v140, %v940
    %v942 = vand.u32 %v941, 4294901760
    %943 = vmatpush1.msra.mxu0 %v942
    %944 = vmatprep.subr.mxu0 0.0
    %945 = vmatpush1.msra.mxu0 0.0
    %946 = vmatprep.subr.mxu0 0.0
    %947 = vmatpush1.msra.mxu0 0.0
    %948 = vmatprep.subr.mxu0 0.0
    %949 = vmatpush1.msra.mxu0 0.0
    %950 = vmatprep.subr.mxu0 0.0
    %951 = vmatpush1.msra.mxu0 0.0
    %952 = vmatprep.subr.mxu0 0.0
    %953 = vmatpush1.msra.mxu0 0.0
    %954 = vmatprep.subr.mxu0 0.0
    %955 = vmatpush1.msra.mxu0 0.0
    %956 = vmatprep.subr.mxu0 0.0
    %957 = vmatpush1.msra.mxu0 0.0
    %958 = vmatprep.subr.mxu0 0.0
    %959 = vmatpush1.msra.mxu0 0.0
    %960 = vmatprep.subr.mxu0 0.0
    %961 = vmatpush1.msra.mxu0 0.0
    %962 = vmatprep.subr.mxu0 0.0
    %963 = vmatpush1.msra.mxu0 0.0
    %964 = vmatprep.subr.mxu0 0.0
    %965 = vmatpush1.msra.mxu0 0.0
    %966 = vmatprep.subr.mxu0 0.0
    %967 = vmatpush1.msra.mxu0 0.0
    %968 = vmatprep.subr.mxu0 0.0
    %969 = vmatpush1.msra.mxu0 0.0
    %970 = vmatprep.subr.mxu0 0.0
    %971 = vmatpush1.msra.mxu0 0.0
    %972 = vmatprep.subr.mxu0 0.0
    %973 = vmatpush1.msra.mxu0 0.0
    %974 = vmatprep.subr.mxu0 0.0
    %975 = vmatpush1.msra.mxu0 0.0
    %976 = vmatprep.subr.mxu0 0.0
    %977 = vmatpush1.msra.mxu0 0.0
    %978 = vmatprep.subr.mxu0 0.0
    %979 = vmatpush1.msra.mxu0 0.0
    %980 = vmatprep.subr.mxu0 0.0
    %981 = vmatpush1.msra.mxu0 0.0
    %982 = vmatprep.subr.mxu0 0.0
    %983 = vmatpush1.msra.mxu0 0.0
    %984 = vmatprep.subr.mxu0 0.0
    %985 = vmatpush1.msra.mxu0 0.0
    %986 = vmatprep.subr.mxu0 0.0
    %987 = vmatpush1.msra.mxu0 0.0
    %988 = vmatprep.subr.mxu0 0.0
    %989 = vmatpush1.msra.mxu0 0.0
    %990 = vmatprep.subr.mxu0 0.0
    %991 = vmatpush1.msra.mxu0 0.0
    %992 = vmatprep.subr.mxu0 0.0
    %993 = vmatpush1.msra.mxu0 0.0
    %994 = vmatprep.subr.mxu0 0.0
    %995 = vmatpush1.msra.mxu0 0.0
    %996 = vmatprep.subr.mxu0 0.0
    %997 = vmatpush1.msra.mxu0 0.0
    %998 = vmatprep.subr.mxu0 0.0
    %999 = vmatpush1.msra.mxu0 0.0
    %1000 = vmatprep.subr.mxu0 0.0
    %1001 = vmatpush1.msra.mxu0 0.0
    %1002 = vmatprep.subr.mxu0 0.0
    %1003 = vmatpush1.msra.mxu0 0.0
    %1004 = vmatprep.subr.mxu0 0.0
    %1005 = vmatpush1.msra.mxu0 0.0
    %1006 = vmatprep.mubr.f32.mxu0 0.0
    %v1007 = vand.u32 %v637, 4294901760
    %1008 = vmatmul.mubr.f32.gmra.mrb[0].mxu0 %v1007
    %v1009 = vpop.f32.mrb[0].mxu0
    %v1010 = vadd.f32 %v936, %v1009
    %v1011 = vpop.f32.mrb[0].mxu0
    %1012 = vdwg.mxu0
    %1013 = vmatprep.subr.mxu0 0.0
    %v1014 = vand.u32 %v140, 4294901760
    %1015 = vmatpush1.msra.mxu0 %v1014
    %1016 = vmatprep.subr.mxu0 0.0
    %1017 = vmatpush1.msra.mxu0 0.0
    %1018 = vmatprep.subr.mxu0 0.0
    %1019 = vmatpush1.msra.mxu0 0.0
    %1020 = vmatprep.subr.mxu0 0.0
    %1021 = vmatpush1.msra.mxu0 0.0
    %1022 = vmatprep.subr.mxu0 0.0
    %1023 = vmatpush1.msra.mxu0 0.0
    %1024 = vmatprep.subr.mxu0 0.0
    %1025 = vmatpush1.msra.mxu0 0.0
    %1026 = vmatprep.subr.mxu0 0.0
    %1027 = vmatpush1.msra.mxu0 0.0
    %1028 = vmatprep.subr.mxu0 0.0
    %1029 = vmatpush1.msra.mxu0 0.0
    %1030 = vmatprep.subr.mxu0 0.0
    %1031 = vmatpush1.msra.mxu0 0.0
    %1032 = vmatprep.subr.mxu0 0.0
    %1033 = vmatpush1.msra.mxu0 0.0
    %1034 = vmatprep.subr.mxu0 0.0
    %1035 = vmatpush1.msra.mxu0 0.0
    %1036 = vmatprep.subr.mxu0 0.0
    %1037 = vmatpush1.msra.mxu0 0.0
    %1038 = vmatprep.subr.mxu0 0.0
    %1039 = vmatpush1.msra.mxu0 0.0
    %1040 = vmatprep.subr.mxu0 0.0
    %1041 = vmatpush1.msra.mxu0 0.0
    %1042 = vmatprep.subr.mxu0 0.0
    %1043 = vmatpush1.msra.mxu0 0.0
    %1044 = vmatprep.subr.mxu0 0.0
    %1045 = vmatpush1.msra.mxu0 0.0
    %1046 = vmatprep.subr.mxu0 0.0
    %1047 = vmatpush1.msra.mxu0 0.0
    %1048 = vmatprep.subr.mxu0 0.0
    %1049 = vmatpush1.msra.mxu0 0.0
    %1050 = vmatprep.subr.mxu0 0.0
    %1051 = vmatpush1.msra.mxu0 0.0
    %1052 = vmatprep.subr.mxu0 0.0
    %1053 = vmatpush1.msra.mxu0 0.0
    %1054 = vmatprep.subr.mxu0 0.0
    %1055 = vmatpush1.msra.mxu0 0.0
    %1056 = vmatprep.subr.mxu0 0.0
    %1057 = vmatpush1.msra.mxu0 0.0
    %1058 = vmatprep.subr.mxu0 0.0
    %1059 = vmatpush1.msra.mxu0 0.0
    %1060 = vmatprep.subr.mxu0 0.0
    %1061 = vmatpush1.msra.mxu0 0.0
    %1062 = vmatprep.subr.mxu0 0.0
    %1063 = vmatpush1.msra.mxu0 0.0
    %1064 = vmatprep.subr.mxu0 0.0
    %1065 = vmatpush1.msra.mxu0 0.0
    %1066 = vmatprep.subr.mxu0 0.0
    %1067 = vmatpush1.msra.mxu0 0.0
    %1068 = vmatprep.subr.mxu0 0.0
    %1069 = vmatpush1.msra.mxu0 0.0
    %1070 = vmatprep.subr.mxu0 0.0
    %1071 = vmatpush1.msra.mxu0 0.0
    %1072 = vmatprep.subr.mxu0 0.0
    %1073 = vmatpush1.msra.mxu0 0.0
    %1074 = vmatprep.subr.mxu0 0.0
    %1075 = vmatpush1.msra.mxu0 0.0
    %1076 = vmatprep.subr.mxu0 0.0
    %1077 = vmatpush1.msra.mxu0 0.0
    %1078 = vmatprep.mubr.f32.mxu0 0.0
    %v1079 = vand.u32 %v637, 4294901760
    %1080 = vmatmul.mubr.f32.gmra.mrb[0].mxu0 %v1079
    %v1081 = vpop.f32.mrb[0].mxu0
    %v1082 = vadd.f32 %v1010, %v1081
    %v1083 = vpop.f32.mrb[0].mxu0
    %1084 = vdwg.mxu0
    %v1085 = vld [vmem:[#allocation2] sm:$0x3]
    %vm1086 = vcmp.gt.f32.partialorder %v614, %v1085
    %v1087 = vsel %vm1086, %v614, %v1085
    %vm1088 = vcmask 1024
    %1089 = vst.msk [vmem:[#allocation2] sm:$0x3] %vm1088, %v1087
    %v1090 = vld [vmem:[#allocation3] sm:$0x3]
    %v1091 = vsel %vm1086, 1, 0
    %1092 = vset.pattern.permute.xlu0 0
    %1093 = vperm.xlu0 %1092, %v1091
    %v1094 = vpop.permute.xlu0 %1093
    %vm1095 = vcmp.eq.s32.totalorder %v1094, 1
    %v1096 = vsel %vm1095, %v1082, %v1090
    %1097 = vst [vmem:[#allocation3] sm:$0x3] %v1096
    // Predicated region
    $region34: #{tpu_custom_call.1} parent=1 // pred_check
      %p1098 = pneg %p38
    $region35: #{tpu_custom_call.1} parent=1 // pred_check_branch
      %1100 = sbr.rel (%p1098) target = $region37
    $region36: #{tpu_custom_call.1} parent=1 // pred_region
      %v1101 = vld [vmem:[#allocation3] sm:$0x3]
      %1102 = vst [vmem:[#allocation7] sm:$0x3] %v1101
    $region37: #{tpu_custom_call.1} parent=1 // pred_fallthru
      _
    // Predicated region
    $region38: #{tpu_custom_call.1} parent=1 // pred_check
      _
    $region39: #{tpu_custom_call.1} parent=1 // pred_check_branch
      %1104 = sbr.rel (0) target = $region41
    $region40: #{tpu_custom_call.1} parent=1 // pred_region
      %s1106 = ssub.s32 32, 32
      %1107 = vsyncadd [#allocation6], %s1106
      %s1109 = sshll.u32 [#allocation7], 4
      %s1110 = int_to_ptr.vmem [resolvable:$true] %s1109
      %1112 = dma.vmem_to_hbm [thread:$0]  %s1110, 32, %s6, [#allocation6]
    $region41: #{tpu_custom_call.1} parent=1 // pred_fallthru
      _
    // Predicated region
    $region42: #{tpu_custom_call.1} parent=1 // pred_check
      _
    $region43: #{tpu_custom_call.1} parent=1 // pred_check_branch
      %1114 = sbr.rel (0) target = $region45
    $region44: #{tpu_custom_call.1} parent=1 // pred_region
      %1115 = dma.done [#allocation6], 32
    $region45: #{tpu_custom_call.1} parent=1 // pred_fallthru
      _
    %1116 = vsyncpa [#allocation5], 1
    %1117 = vsyncpa [#allocation6], 1

</llo_original>
